<compile_context>
chip_gen: v5e
topology: v5e:2x2
jax: 0.10.0
libtpu: 0.0.40
codegen_flags: <defaults>
</compile_context>

<pallas_src>
import functools

import jax
import jax.numpy as jnp
from jax.experimental import pallas as pl
from jax.experimental.pallas import tpu as pltpu


def _round_up(x, m):
    return ((x + m - 1) // m) * m


def _pad_dim(d):
    """Lane-dense padding: multiple of 128; prefer 256 (v6e/v7x MXU is 2x256x256)
    when the extra padding is relatively small."""
    p = _round_up(d, 128)
    if p % 256 != 0 and p >= 1024:
        p = _round_up(d, 256)
    return p


def _vmem_cap_bytes():
    """Per-generation VMEM budget (v5e/v6e: 128 MiB physical, v7x: 64 MiB)."""
    try:
        phys = int(pltpu.get_tpu_info().vmem_capacity_bytes)
        if phys <= 0:
            phys = 64 << 20
    except Exception:
        phys = 64 << 20          # safe fallback, fits every generation
    return min((phys * 7) // 8, 112 << 20)


def _clamp_tm(tm, m_rows):
    tm = max(8, min(tm, _round_up(m_rows, 8)))
    return _round_up(tm, 8)


def _divisor_tile(total, target):
    """Largest multiple of 128 that divides `total` and is <= target."""
    target = max(128, min(target, total))
    best, t = 128, 128
    while t <= target:
        if total % t == 0:
            best = t
        t += 128
    return best


# --------------------------------------------------------------------------
# Kernels
# --------------------------------------------------------------------------
def _mlp_kernel_direct(x_ref, w1_ref, b1_ref, w2_ref, b2_ref, o_ref):
    """Resident-weight / single-hidden-chunk path: no accumulator scratch."""
    h = jnp.dot(x_ref[...], w1_ref[...], preferred_element_type=jnp.float32)
    h = jnp.maximum(h + b1_ref[...], 0.0)
    out = jnp.dot(h.astype(w2_ref.dtype), w2_ref[...],
                  preferred_element_type=jnp.float32)
    o_ref[...] = (out + b2_ref[...]).astype(o_ref.dtype)


def _mlp_kernel_stream(x_ref, w1_ref, b1_ref, w2_ref, b2_ref, o_ref, acc_ref):
    """Grid = (row tiles, hidden chunks). Layer-2 partials accumulate in f32."""
    kh = pl.program_id(1)

    @pl.when(kh == 0)
    def _init():
        acc_ref[...] = jnp.zeros_like(acc_ref)

    h = jnp.dot(x_ref[...], w1_ref[...], preferred_element_type=jnp.float32)
    h = jnp.maximum(h + b1_ref[...], 0.0)
    acc_ref[...] += jnp.dot(h.astype(w2_ref.dtype), w2_ref[...],
                            preferred_element_type=jnp.float32)

    @pl.when(kh == pl.num_programs(1) - 1)
    def _finalize():
        o_ref[...] = (acc_ref[...] + b2_ref[...]).astype(o_ref.dtype)


# --------------------------------------------------------------------------
# Host-side wrappers
# --------------------------------------------------------------------------
def prepare_mlp_params(w1, b1, w2, b2, *, compute_dtype=jnp.bfloat16):
    """One-time pad + cast of the weights (hoisted out of the per-call path).
    w1: (dim_in, hidden); b1: (1, hidden); w2: (hidden, dim_out); b2: (1, dim_out).
    """
    dim_in, hidden = w1.shape
    dim_out = w2.shape[1]
    dim_in_p, hidden_p, dim_out_p = _pad_dim(dim_in), _pad_dim(hidden), _pad_dim(dim_out)

    w1p = jnp.zeros((dim_in_p, hidden_p), compute_dtype).at[:dim_in, :hidden].set(
        w1.astype(compute_dtype))
    b1p = jnp.zeros((1, hidden_p), jnp.float32).at[:, :hidden].set(
        b1.astype(jnp.float32))
    w2p = jnp.zeros((hidden_p, dim_out_p), compute_dtype).at[:hidden, :dim_out].set(
        w2.astype(compute_dtype))
    b2p = jnp.zeros((1, dim_out_p), jnp.float32).at[:, :dim_out].set(
        b2.astype(jnp.float32))
    return w1p, b1p, w2p, b2p


@functools.partial(jax.jit,
                   static_argnames=("dim_out", "out_dtype", "tm", "th", "mode"))
def mlp_forward(x, w1p, b1p, w2p, b2p, *, dim_out, out_dtype=jnp.bfloat16,
                tm=None, th=None, mode="auto"):
    """x: (M, dim_in) f32; padded params from prepare_mlp_params.
    Returns (M, dim_out) in out_dtype (bf16 by default).
    mode: "auto" | "resident" | "stream".
    """
    M, dim_in = x.shape
    dim_in_p, hidden_p = w1p.shape
    dim_out_p = w2p.shape[1]
    cdt = w1p.dtype
    out_b = jnp.dtype(out_dtype).itemsize
    cap = _vmem_cap_bytes()

    # ---- static tile / mode selection -------------------------------------
    def resident_bytes(tm_):
        return (2 * (w1p.size * 2 + w2p.size * 2 + b1p.size * 4 + b2p.size * 4)
                + 2 * tm_ * dim_in_p * 2          # x tile (double-buffered bf16)
                + 2 * tm_ * dim_out_p * out_b     # out tile
                + tm_ * hidden_p * 4              # h intermediate (f32)
                + tm_ * hidden_p * 2              # bf16 cast of h
                + tm_ * dim_out_p * 4             # f32 temp before cast
                + (2 << 20))

    def stream_bytes(tm_, th_):
        return (2 * tm_ * dim_in_p * 2            # x
                + 2 * dim_in_p * th_ * 2          # W1 chunk
                + 2 * th_ * dim_out_p * 2         # W2 chunk
                + 2 * th_ * 4 + 2 * dim_out_p * 4   # biases
                + 2 * tm_ * dim_out_p * out_b     # out
                + tm_ * dim_out_p * 4             # f32 accumulator scratch
                + (2 << 20))

    tm_res = _clamp_tm(tm if tm is not None else 256, M)
    resident_ok = resident_bytes(tm_res) <= cap
    th_sel = _divisor_tile(hidden_p, th if th is not None else min(hidden_p, 512))
    n_chunks = hidden_p // th_sel

    if mode == "resident":
        use_direct = True
    elif mode == "stream":
        use_direct = False
    else:
        use_direct = resident_ok or (n_chunks == 1)

    if use_direct:
        tm_sel = tm_res
        vmem_need = resident_bytes(tm_sel)
    else:
        # Streaming: larger tm amortizes the per-row-tile weight stream.
        tm_sel = _clamp_tm(tm if tm is not None else 512, M)
        while stream_bytes(tm_sel, th_sel) > cap and tm_sel > 128:
            tm_sel = max(128, tm_sel // 2)
        while stream_bytes(tm_sel, th_sel) > cap and th_sel > 128:
            th_sel = _divisor_tile(hidden_p, max(128, th_sel // 2))
        vmem_need = stream_bytes(tm_sel, th_sel)

    vmem_limit = int(min(cap, max(vmem_need + vmem_need // 4, 32 << 20)))
    M_p = _round_up(M, tm_sel)

    # ---- pad x (only per-call data movement) -------------------------------
    if M_p == M and dim_in_p == dim_in and x.dtype == cdt:
        xp = x
    else:
        xp = jnp.zeros((M_p, dim_in_p), cdt).at[:M, :dim_in].set(x.astype(cdt))

    # ---- grid / specs -------------------------------------------------------
    if use_direct:
        grid = (M_p // tm_sel,)
        in_specs = [
            pl.BlockSpec((tm_sel, dim_in_p), lambda i: (i, 0)),        # x tile
            pl.BlockSpec((dim_in_p, hidden_p), lambda i: (0, 0)),      # W1 resident
            pl.BlockSpec((1, hidden_p), lambda i: (0, 0)),             # b1 resident
            pl.BlockSpec((hidden_p, dim_out_p), lambda i: (0, 0)),     # W2 resident
            pl.BlockSpec((1, dim_out_p), lambda i: (0, 0)),            # b2 resident
        ]
        out_spec = pl.BlockSpec((tm_sel, dim_out_p), lambda i: (i, 0))
        scratch = []
        kernel = _mlp_kernel_direct
        dims = ("parallel",)
        w_reads = 1
    else:
        grid = (M_p // tm_sel, hidden_p // th_sel)
        in_specs = [
            pl.BlockSpec((tm_sel, dim_in_p), lambda i, kh: (i, 0)),    # x tile
            pl.BlockSpec((dim_in_p, th_sel), lambda i, kh: (0, kh)),   # W1 chunk
            pl.BlockSpec((1, th_sel), lambda i, kh: (0, kh)),          # b1 chunk
            pl.BlockSpec((th_sel, dim_out_p), lambda i, kh: (kh, 0)),  # W2 chunk
            pl.BlockSpec((1, dim_out_p), lambda i, kh: (0, 0)),        # b2
        ]
        out_spec = pl.BlockSpec((tm_sel, dim_out_p), lambda i, kh: (i, 0))
        scratch = [pltpu.VMEM((tm_sel, dim_out_p), jnp.float32)]
        kernel = _mlp_kernel_stream
        dims = ("parallel", "arbitrary")
        w_reads = M_p // tm_sel

    flops = 2 * M_p * (dim_in_p * hidden_p + hidden_p * dim_out_p)
    bytes_accessed = (xp.size * 2
                      + w_reads * (w1p.size * 2 + w2p.size * 2
                                   + b1p.size * 4 + b2p.size * 4)
                      + M_p * dim_out_p * out_b)

    out_p = pl.pallas_call(
        kernel,
        out_shape=jax.ShapeDtypeStruct((M_p, dim_out_p), out_dtype),
        grid_spec=pltpu.PrefetchScalarGridSpec(
            num_scalar_prefetch=0,
            grid=grid,
            in_specs=in_specs,
            out_specs=out_spec,
            scratch_shapes=scratch),
        compiler_params=pltpu.CompilerParams(
            dimension_semantics=dims,
            vmem_limit_bytes=vmem_limit),
        cost_estimate=pl.CostEstimate(
            flops=flops, transcendentals=0, bytes_accessed=bytes_accessed),
    )(xp, w1p, b1p, w2p, b2p)

    if M_p != M or dim_out_p != dim_out:
        out_p = out_p[:M, :dim_out]
    return out_p


def init_mlp_params(key, dim_in, dim_out=None, hidden_ratio=4.0,
                    dtype=jnp.float32):
    """nn.Linear default init U(-1/sqrt(fan_in), 1/sqrt(fan_in)); weights stored
    as (in, out) so the kernel computes x @ W directly."""
    dim_out = dim_out or dim_in
    dim_hidden = int(dim_in * hidden_ratio)
    k1, k2, k3, k4 = jax.random.split(key, 4)
    bound1 = 1.0 / (dim_in ** 0.5)
    bound2 = 1.0 / (dim_hidden ** 0.5)
    w1 = jax.random.uniform(k1, (dim_in, dim_hidden), dtype, -bound1, bound1)
    b1 = jax.random.uniform(k2, (1, dim_hidden), dtype, -bound1, bound1)
    w2 = jax.random.uniform(k3, (dim_hidden, dim_out), dtype, -bound2, bound2)
    b2 = jax.random.uniform(k4, (1, dim_out), dtype, -bound2, bound2)
    return w1, b1, w2, b2


def _jnp_reference(x, w1, b1, w2, b2):
    """Pure-JAX reference following the same bf16-matmul / f32-accumulate path."""
    xb = x.astype(jnp.bfloat16)
    h = jnp.dot(xb, w1.astype(jnp.bfloat16), preferred_element_type=jnp.float32)
    h = jnp.maximum(h + b1.astype(jnp.float32), 0.0).astype(jnp.bfloat16)
    out = jnp.dot(h, w2.astype(jnp.bfloat16), preferred_element_type=jnp.float32)
    return out + b2.astype(jnp.float32)
    # TODO(synk): exact f32-parity with a PyTorch f32 nn.Linear MLP would need an
    # f32 (or bf16x3) matmul path; this kernel intentionally uses bf16 MXU inputs.


if __name__ == "__main__":
    key = jax.random.PRNGKey(0)
    kx1, kp1, kx2, kp2 = jax.random.split(key, 4)

    # Test 1: module-consistent small shapes (dim_in=32 -> hidden=128 -> out=32).
    # Exercises the resident-weight / no-accumulator direct path, bf16 output.
    batch, dim_in = 8, 32
    x = jax.random.normal(kx1, (batch, dim_in), jnp.float32)
    w1, b1, w2, b2 = init_mlp_params(kp1, dim_in)
    params = prepare_mlp_params(w1, b1, w2, b2)
    out = jax.block_until_ready(mlp_forward(x, *params, dim_out=dim_in))
    ref = _jnp_reference(x, w1, b1, w2, b2)
    assert out.shape == (batch, dim_in)
    assert out.dtype == jnp.bfloat16
    assert jnp.allclose(out.astype(jnp.float32), ref, atol=3e-2, rtol=3e-2), \
        "mismatch (test 1)"

    # Test 2: force the streaming (hidden-chunked, f32-accumulator) path with
    # multiple row tiles and hidden chunks; f32 output.
    M2, d2 = 256, 128                     # hidden = 512, dim_out = 128
    x2 = jax.random.normal(kx2, (M2, d2), jnp.float32)
    w1b, b1b, w2b, b2b = init_mlp_params(kp2, d2)
    params2 = prepare_mlp_params(w1b, b1b, w2b, b2b)
    out2 = jax.block_until_ready(
        mlp_forward(x2, *params2, dim_out=d2, out_dtype=jnp.float32,
                    tm=128, th=128, mode="stream"))
    ref2 = _jnp_reference(x2, w1b, b1b, w2b, b2b)
    assert out2.shape == (M2, d2)
    assert jnp.allclose(out2, ref2, atol=2e-2, rtol=2e-2), "mismatch (test 2)"

    print("KERNEL_OK")
</pallas_src>

<mosaic_0001>
module attributes {stable_mosaic.version = 11 : i64} {
  func.func @_mlp_kernel_direct(%arg0: i32, %arg1: memref<8x128xbf16, #tpu.memory_space<vmem>>, %arg2: memref<128x128xbf16, #tpu.memory_space<vmem>>, %arg3: memref<1x128xf32, #tpu.memory_space<vmem>>, %arg4: memref<128x128xbf16, #tpu.memory_space<vmem>>, %arg5: memref<1x128xf32, #tpu.memory_space<vmem>>, %arg6: memref<8x128xbf16, #tpu.memory_space<vmem>>) attributes {dimension_semantics = [#tpu.dimension_semantics<parallel>], iteration_bounds = array<i64: 1>, scalar_prefetch = 0 : i64, scratch_operands = 0 : i64, tpu.core_type = #tpu.core_type<tc>, window_params = [{transform_indices = @transform_0, window_bounds = array<i64: 8, 128>}, {pipeline_mode = #tpu.pipeline_mode<synchronous>, transform_indices = @transform_1, window_bounds = array<i64: 128, 128>}, {pipeline_mode = #tpu.pipeline_mode<synchronous>, transform_indices = @transform_2, window_bounds = array<i64: 1, 128>}, {pipeline_mode = #tpu.pipeline_mode<synchronous>, transform_indices = @transform_3, window_bounds = array<i64: 128, 128>}, {pipeline_mode = #tpu.pipeline_mode<synchronous>, transform_indices = @transform_4, window_bounds = array<i64: 1, 128>}, {transform_indices = @transform_5, window_bounds = array<i64: 8, 128>}]} {
    %c0 = arith.constant 0 : index
    %c0_0 = arith.constant 0 : index
    %0 = vector.load %arg1[%c0, %c0_0] : memref<8x128xbf16, #tpu.memory_space<vmem>>, vector<8x128xbf16>
    %c0_1 = arith.constant 0 : index
    %c0_2 = arith.constant 0 : index
    %1 = vector.load %arg2[%c0_1, %c0_2] : memref<128x128xbf16, #tpu.memory_space<vmem>>, vector<128x128xbf16>
    %cst = arith.constant dense<0.000000e+00> : vector<8x128xf32>
    %2 = tpu.matmul %0, %1, %cst {dimension_numbers = #tpu.dot_dimension_numbers<[1], [0], [0], [1], [0, 0, 1, 1], [], []>} : vector<8x128xbf16>, vector<128x128xbf16>, vector<8x128xf32> -> vector<8x128xf32>
    %c0_3 = arith.constant 0 : index
    %c0_4 = arith.constant 0 : index
    %3 = vector.load %arg3[%c0_3, %c0_4] : memref<1x128xf32, #tpu.memory_space<vmem>>, vector<1x128xf32>
    %4 = vector.broadcast %3 : vector<1x128xf32> to vector<8x128xf32>
    %5 = arith.addf %2, %4 : vector<8x128xf32>
    %cst_5 = arith.constant 0.000000e+00 : f32
    %6 = vector.broadcast %cst_5 : f32 to vector<8x128xf32>
    %7 = arith.maximumf %5, %6 : vector<8x128xf32>
    %8 = arith.truncf %7 : vector<8x128xf32> to vector<8x128xbf16>
    %c0_6 = arith.constant 0 : index
    %c0_7 = arith.constant 0 : index
    %9 = vector.load %arg4[%c0_6, %c0_7] : memref<128x128xbf16, #tpu.memory_space<vmem>>, vector<128x128xbf16>
    %cst_8 = arith.constant dense<0.000000e+00> : vector<8x128xf32>
    %10 = tpu.matmul %8, %9, %cst_8 {dimension_numbers = #tpu.dot_dimension_numbers<[1], [0], [0], [1], [0, 0, 1, 1], [], []>} : vector<8x128xbf16>, vector<128x128xbf16>, vector<8x128xf32> -> vector<8x128xf32>
    %c0_9 = arith.constant 0 : index
    %c0_10 = arith.constant 0 : index
    %11 = vector.load %arg5[%c0_9, %c0_10] : memref<1x128xf32, #tpu.memory_space<vmem>>, vector<1x128xf32>
    %12 = vector.broadcast %11 : vector<1x128xf32> to vector<8x128xf32>
    %13 = arith.addf %10, %12 : vector<8x128xf32>
    %14 = arith.truncf %13 : vector<8x128xf32> to vector<8x128xbf16>
    %c0_11 = arith.constant 0 : index
    %c0_12 = arith.constant 0 : index
    %15 = vector.load %arg6[%c0_11, %c0_12] : memref<8x128xbf16, #tpu.memory_space<vmem>>, vector<8x128xbf16>
    tpu.vector_store %arg6[%c0_11, %c0_12], %14 {strides = array<i32>} : memref<8x128xbf16, #tpu.memory_space<vmem>>, vector<8x128xbf16>,
    return
  }
  func.func @transform_0(%arg0: i32) -> (i32, i32) {
    %c0_i32 = arith.constant 0 : i32
    %c0_i32_0 = arith.constant 0 : i32
    return %arg0, %c0_i32 : i32, i32
  }
  func.func @transform_1(%arg0: i32) -> (i32, i32) {
    %c0_i32 = arith.constant 0 : i32
    %c0_i32_0 = arith.constant 0 : i32
    %c0_i32_1 = arith.constant 0 : i32
    return %c0_i32, %c0_i32_0 : i32, i32
  }
  func.func @transform_2(%arg0: i32) -> (i32, i32) {
    %c0_i32 = arith.constant 0 : i32
    %c0_i32_0 = arith.constant 0 : i32
    %c0_i32_1 = arith.constant 0 : i32
    return %c0_i32, %c0_i32_0 : i32, i32
  }
  func.func @transform_3(%arg0: i32) -> (i32, i32) {
    %c0_i32 = arith.constant 0 : i32
    %c0_i32_0 = arith.constant 0 : i32
    %c0_i32_1 = arith.constant 0 : i32
    return %c0_i32, %c0_i32_0 : i32, i32
  }
  func.func @transform_4(%arg0: i32) -> (i32, i32) {
    %c0_i32 = arith.constant 0 : i32
    %c0_i32_0 = arith.constant 0 : i32
    %c0_i32_1 = arith.constant 0 : i32
    return %c0_i32, %c0_i32_0 : i32, i32
  }
  func.func @transform_5(%arg0: i32) -> (i32, i32) {
    %c0_i32 = arith.constant 0 : i32
    %c0_i32_0 = arith.constant 0 : i32
    return %arg0, %c0_i32 : i32, i32
  }
}

</mosaic_0001>

<llo_original>
// kernel: mlp_forward.1
$region0: #{mlp_forward.1}
  #allocation0 [shape = 'u32[]', space=smem, size = 0x4, offset = 0x4, fixed_abs, tag = 'smem constant byte address 0x4 - core index']
  #allocation1 [shape = 'u32[72,128]{1,0:T(1,128)}', space=vmem, size = 0x9000, scoped, tag = 'internal scratch']
  %s0 = inlined_call_operand.vmem [shape: bf16[8,128], index: 0, kind: input, shape index: {}]
  %s1 = inlined_call_operand.hbm [shape: bf16[128,128], index: 1, kind: input, shape index: {}]
  %s2 = inlined_call_operand.vmem [shape: f32[1,128], index: 2, kind: input, shape index: {}]
  %s3 = inlined_call_operand.hbm [shape: bf16[128,128], index: 3, kind: input, shape index: {}]
  %s4 = inlined_call_operand.vmem [shape: f32[1,128], index: 4, kind: input, shape index: {}]
  %s5 = inlined_call_operand.hbm [shape: bf16[8,128], index: 5, kind: output, shape index: {}]
  %s6 = sld [smem:[#allocation0]]
  $region38: #{mlp_forward.1} parent=0
    _
  %s8 = ssub.s32 1, %s6
  %s9 = scalar_select 0, %s8, %s6
  $region1: #{mlp_forward.1} parent=0
    #allocation2 [shape = 'u8[32768]{0}', space=vmem, size = 0x8000, scoped, tag = 'input window, operand 1, single buffered']
    #allocation3 [shape = 's32[1]{0}', space=sflag, size = 0x4, scoped, tag = 'scoped memory for mlp_forward.1']
    #allocation4 [shape = 's32[1]{0}', space=sflag, size = 0x4, scoped, tag = 'scoped memory for mlp_forward.1']
    #allocation5 [shape = 'u8[32768]{0}', space=vmem, size = 0x8000, scoped, tag = 'input window, operand 3, single buffered']
    #allocation6 [shape = 's32[1]{0}', space=sflag, size = 0x4, scoped, tag = 'scoped memory for mlp_forward.1']
    #allocation7 [shape = 'u8[2048]{0}', space=vmem, size = 0x800, scoped, tag = 'output window, operand 0, single buffered']
    %10 = vsyncpa [#allocation3], 0
    %11 = vsyncpa [#allocation6], 0
    %12 = vsyncpa [#allocation4], 0
    // Predicated region
    $region2: #{mlp_forward.1} parent=1 // pred_check
      _
    $region3: #{mlp_forward.1} parent=1 // pred_check_branch
      %14 = sbr.rel (0) target = $region5
    $region4: #{mlp_forward.1} parent=1 // pred_region
      _
    $region5: #{mlp_forward.1} parent=1 // pred_fallthru
      _
    // Predicated region
    $region6: #{mlp_forward.1} parent=1 // pred_check
      _
    $region7: #{mlp_forward.1} parent=1 // pred_check_branch
      %16 = sbr.rel (0) target = $region9
    $region8: #{mlp_forward.1} parent=1 // pred_region
      %18 = vsyncadd [#allocation3], 0
      %s19 = sshll.u32 %s1, 4
      %s20 = int_to_ptr.hbm [resolvable:$true] %s19
      %s21 = sshll.u32 [#allocation2], 4
      %s22 = int_to_ptr.vmem [resolvable:$true] %s21
      %27 = dma.hbm_to_vmem [thread:$0]  %s20, 1024, %s22, [#allocation3], 64, 64, 4
    $region9: #{mlp_forward.1} parent=1 // pred_fallthru
      _
    // Predicated region
    $region10: #{mlp_forward.1} parent=1 // pred_check
      _
    $region11: #{mlp_forward.1} parent=1 // pred_check_branch
      %29 = sbr.rel (0) target = $region13
    $region12: #{mlp_forward.1} parent=1 // pred_region
      _
    $region13: #{mlp_forward.1} parent=1 // pred_fallthru
      _
    // Predicated region
    $region14: #{mlp_forward.1} parent=1 // pred_check
      _
    $region15: #{mlp_forward.1} parent=1 // pred_check_branch
      %31 = sbr.rel (0) target = $region17
    $region16: #{mlp_forward.1} parent=1 // pred_region
      %33 = vsyncadd [#allocation6], 0
      %s34 = sshll.u32 %s3, 4
      %s35 = int_to_ptr.hbm [resolvable:$true] %s34
      %s36 = sshll.u32 [#allocation5], 4
      %s37 = int_to_ptr.vmem [resolvable:$true] %s36
      %42 = dma.hbm_to_vmem [thread:$0]  %s35, 1024, %s37, [#allocation6], 64, 64, 4
    $region17: #{mlp_forward.1} parent=1 // pred_fallthru
      _
    // Predicated region
    $region18: #{mlp_forward.1} parent=1 // pred_check
      _
    $region19: #{mlp_forward.1} parent=1 // pred_check_branch
      %44 = sbr.rel (0) target = $region21
    $region20: #{mlp_forward.1} parent=1 // pred_region
      _
    $region21: #{mlp_forward.1} parent=1 // pred_fallthru
      _
    // Predicated region
    $region22: #{mlp_forward.1} parent=1 // pred_check
      _
    $region23: #{mlp_forward.1} parent=1 // pred_check_branch
      %46 = sbr.rel (0) target = $region25
    $region24: #{mlp_forward.1} parent=1 // pred_region
      %48 = dma.done [#allocation3], 1024
    $region25: #{mlp_forward.1} parent=1 // pred_fallthru
      _
    // Predicated region
    $region26: #{mlp_forward.1} parent=1 // pred_check
      _
    $region27: #{mlp_forward.1} parent=1 // pred_check_branch
      %50 = sbr.rel (0) target = $region29
    $region28: #{mlp_forward.1} parent=1 // pred_region
      %52 = dma.done [#allocation6], 1024
    $region29: #{mlp_forward.1} parent=1 // pred_fallthru
      _
    %v53 = vld [vmem:[%s0] sm:$0xf]
    %v54 = vld [vmem:[#allocation2] sm:$0xf]
    %v55 = vld [vmem:[#allocation2 + $0x4] sm:$0xf]
    %v56 = vld [vmem:[#allocation2 + $0x8] sm:$0xf]
    %v57 = vld [vmem:[#allocation2 + $0xc] sm:$0xf]
    %v58 = vld [vmem:[#allocation2 + $0x10] sm:$0xf]
    %v59 = vld [vmem:[#allocation2 + $0x14] sm:$0xf]
    %v60 = vld [vmem:[#allocation2 + $0x18] sm:$0xf]
    %v61 = vld [vmem:[#allocation2 + $0x1c] sm:$0xf]
    %v62 = vld [vmem:[#allocation2 + $0x20] sm:$0xf]
    %v63 = vld [vmem:[#allocation2 + $0x24] sm:$0xf]
    %v64 = vld [vmem:[#allocation2 + $0x28] sm:$0xf]
    %v65 = vld [vmem:[#allocation2 + $0x2c] sm:$0xf]
    %v66 = vld [vmem:[#allocation2 + $0x30] sm:$0xf]
    %v67 = vld [vmem:[#allocation2 + $0x34] sm:$0xf]
    %v68 = vld [vmem:[#allocation2 + $0x38] sm:$0xf]
    %v69 = vld [vmem:[#allocation2 + $0x3c] sm:$0xf]
    %v70 = vld [vmem:[%s2] sm:$0x1]
    %v72 = vperm.slane %v70, 0
    %v90 = vunpack.c.l.b16 %v54
    %v91 = vunpack.c.l.b16 %v55
    %v92 = vunpack.c.l.b16 %v56
    %v93 = vunpack.c.l.b16 %v57
    %v94 = vunpack.c.l.b16 %v58
    %v95 = vunpack.c.l.b16 %v59
    %v96 = vunpack.c.l.b16 %v60
    %v97 = vunpack.c.l.b16 %v61
    %v98 = vunpack.c.l.b16 %v62
    %v99 = vunpack.c.l.b16 %v63
    %v100 = vunpack.c.l.b16 %v64
    %v101 = vunpack.c.l.b16 %v65
    %v102 = vunpack.c.l.b16 %v66
    %v103 = vunpack.c.l.b16 %v67
    %v104 = vunpack.c.l.b16 %v68
    %v105 = vunpack.c.l.b16 %v69
    %v106 = vpack.c.b16 %v91, %v90
    %v107 = vpack.c.b16 %v93, %v92
    %v108 = vpack.c.b16 %v95, %v94
    %v109 = vpack.c.b16 %v97, %v96
    %v110 = vpack.c.b16 %v99, %v98
    %v111 = vpack.c.b16 %v101, %v100
    %v112 = vpack.c.b16 %v103, %v102
    %v113 = vpack.c.b16 %v105, %v104
    %122 = vmatpush.bf16.msra.mxu0 %v113
    %123 = vmatpush.bf16.msra.mxu0 %v112
    %124 = vmatpush.bf16.msra.mxu0 %v111
    %125 = vmatpush.bf16.msra.mxu0 %v110
    %126 = vmatpush.bf16.msra.mxu0 %v109
    %127 = vmatpush.bf16.msra.mxu0 %v108
    %128 = vmatpush.bf16.msra.mxu0 %v107
    %129 = vmatpush.bf16.msra.mxu0 %v106
    %130 = vmatmul.bf16.gmra.mxu0 %v53
    %v131 = vpop.f32.mrf.mxu0
    %v132 = vadd.f32 %v72, %v131
    %v133 = vpop.f32.mrf.mxu0
    %134 = vdwg.mxu0
    %v135 = vmax.f32 %v132, 0.0
    %v136 = vpack.c.bf16 %v135, %v135
    %v137 = vld [vmem:[#allocation5] sm:$0xf]
    %v138 = vld [vmem:[#allocation5 + $0x4] sm:$0xf]
    %v139 = vld [vmem:[#allocation5 + $0x8] sm:$0xf]
    %v140 = vld [vmem:[#allocation5 + $0xc] sm:$0xf]
    %v141 = vld [vmem:[#allocation5 + $0x10] sm:$0xf]
    %v142 = vld [vmem:[#allocation5 + $0x14] sm:$0xf]
    %v143 = vld [vmem:[#allocation5 + $0x18] sm:$0xf]
    %v144 = vld [vmem:[#allocation5 + $0x1c] sm:$0xf]
    %v145 = vld [vmem:[#allocation5 + $0x20] sm:$0xf]
    %v146 = vld [vmem:[#allocation5 + $0x24] sm:$0xf]
    %v147 = vld [vmem:[#allocation5 + $0x28] sm:$0xf]
    %v148 = vld [vmem:[#allocation5 + $0x2c] sm:$0xf]
    %v149 = vld [vmem:[#allocation5 + $0x30] sm:$0xf]
    %v150 = vld [vmem:[#allocation5 + $0x34] sm:$0xf]
    %v151 = vld [vmem:[#allocation5 + $0x38] sm:$0xf]
    %v152 = vld [vmem:[#allocation5 + $0x3c] sm:$0xf]
    %v153 = vld [vmem:[%s4] sm:$0x1]
    %v155 = vperm.slane %v153, 0
    %v173 = vunpack.c.l.b16 %v137
    %v174 = vunpack.c.l.b16 %v138
    %v175 = vunpack.c.l.b16 %v139
    %v176 = vunpack.c.l.b16 %v140
    %v177 = vunpack.c.l.b16 %v141
    %v178 = vunpack.c.l.b16 %v142
    %v179 = vunpack.c.l.b16 %v143
    %v180 = vunpack.c.l.b16 %v144
    %v181 = vunpack.c.l.b16 %v145
    %v182 = vunpack.c.l.b16 %v146
    %v183 = vunpack.c.l.b16 %v147
    %v184 = vunpack.c.l.b16 %v148
    %v185 = vunpack.c.l.b16 %v149
    %v186 = vunpack.c.l.b16 %v150
    %v187 = vunpack.c.l.b16 %v151
    %v188 = vunpack.c.l.b16 %v152
    %v189 = vpack.c.b16 %v174, %v173
    %v190 = vpack.c.b16 %v176, %v175
    %v191 = vpack.c.b16 %v178, %v177
    %v192 = vpack.c.b16 %v180, %v179
    %v193 = vpack.c.b16 %v182, %v181
    %v194 = vpack.c.b16 %v184, %v183
    %v195 = vpack.c.b16 %v186, %v185
    %v196 = vpack.c.b16 %v188, %v187
    %205 = vmatpush.bf16.msra.mxu0 %v196
    %206 = vmatpush.bf16.msra.mxu0 %v195
    %207 = vmatpush.bf16.msra.mxu0 %v194
    %208 = vmatpush.bf16.msra.mxu0 %v193
    %209 = vmatpush.bf16.msra.mxu0 %v192
    %210 = vmatpush.bf16.msra.mxu0 %v191
    %211 = vmatpush.bf16.msra.mxu0 %v190
    %212 = vmatpush.bf16.msra.mxu0 %v189
    %213 = vmatmul.bf16.gmra.mxu0 %v136
    %v214 = vpop.f32.mrf.mxu0
    %v215 = vadd.f32 %v155, %v214
    %v216 = vpop.f32.mrf.mxu0
    %217 = vdwg.mxu0
    %v218 = vpack.c.bf16 %v215, %v215
    %219 = vst [vmem:[#allocation7] sm:$0xf] %v218
    // Predicated region
    $region30: #{mlp_forward.1} parent=1 // pred_check
      _
    $region31: #{mlp_forward.1} parent=1 // pred_check_branch
      %221 = sbr.rel (0) target = $region33
    $region32: #{mlp_forward.1} parent=1 // pred_region
      %223 = vsyncadd [#allocation4], 0
      %s225 = sshll.u32 [#allocation7], 4
      %s226 = int_to_ptr.vmem [resolvable:$true] %s225
      %s227 = sshll.u32 %s5, 4
      %s228 = int_to_ptr.hbm [resolvable:$true] %s227
      %230 = dma.vmem_to_hbm [thread:$0]  %s226, 64, %s228, [#allocation4]
    $region33: #{mlp_forward.1} parent=1 // pred_fallthru
      _
    // Predicated region
    $region34: #{mlp_forward.1} parent=1 // pred_check
      _
    $region35: #{mlp_forward.1} parent=1 // pred_check_branch
      %232 = sbr.rel (0) target = $region37
    $region36: #{mlp_forward.1} parent=1 // pred_region
      %234 = dma.done [#allocation4], 64
    $region37: #{mlp_forward.1} parent=1 // pred_fallthru
      _
    %235 = vsyncpa [#allocation3], 1
    %236 = vsyncpa [#allocation6], 1
    %237 = vsyncpa [#allocation4], 1

</llo_original>
